<compile_context>
chip_gen: v5e
topology: v5e:2x2
jax: 0.10.0
libtpu: 0.0.40
codegen_flags: <defaults>
</compile_context>

<pallas_src>
import jax
import jax.numpy as jnp
from jax.experimental import pallas as pl
from jax.experimental.pallas import tpu as pltpu

# ----- model hyperparameters (match the PyTorch module defaults) -----
HIDDEN_SIZE = 2
INPUT_SIZE = 8
NUM_LAYERS = 1          # single-layer LSTM, as in the module
OUTPUT_SIZE = 4
SEQ_LENGTH = 8
BATCH = 2
FC1_SIZE = 128
LANE = 128              # one gate per 128-lane slot
GATES = 4 * LANE        # gate-padded width

# ----- consolidated parameter slab layout: (SLAB_ROWS, GATES) f32, one DMA -----
ROW_WIH = 0                                   # (I, GATES)   gate-padded, 0.5-scaled i/f/o
ROW_WHH = ROW_WIH + INPUT_SIZE                # (H, GATES)   gate-padded, 0.5-scaled i/f/o
ROW_B   = ROW_WHH + HIDDEN_SIZE               # (1, GATES)   combined bias, gate-padded/scaled
ROW_W1  = ROW_B + 1                           # (H, FC1)     fc_1 weight rows (lanes 0..127)
ROW_B1  = ROW_W1 + HIDDEN_SIZE                # (1, FC1)
ROW_W2  = ROW_B1 + 1                          # (O, FC1)     fc weight (PyTorch layout)
ROW_B2  = ROW_W2 + OUTPUT_SIZE                # (1, O)
SLAB_ROWS = ((ROW_B2 + 1 + 7) // 8) * 8       # pad rows to a sublane-tile multiple


def lstm_head_kernel(x_ref, p_ref, out_ref):
    """Fused forward: 1-layer LSTM recurrence -> relu -> fc_1 -> relu -> fc.

    x_ref   : (B, T, I)          batch-first input (no wrapper transpose)
    p_ref   : (SLAB_ROWS, GATES) consolidated parameter slab (see layout above)
    out_ref : (B, O)
    """
    B, T, I = x_ref.shape
    H = HIDDEN_SIZE
    O = out_ref.shape[1]
    F1 = FC1_SIZE
    G = GATES

    # ---- unpack the parameter slab (static slices, loaded once) ----
    wih = p_ref[ROW_WIH:ROW_WIH + I, :]                               # (I, G)
    bias = p_ref[ROW_B:ROW_B + 1, :]                                  # (1, G)
    # loop-invariant sublane broadcasts, hoisted out of the recurrence
    whh_b = [jnp.broadcast_to(p_ref[ROW_WHH + j:ROW_WHH + j + 1, :], (B, G))
             for j in range(H)]
    w1_b = [jnp.broadcast_to(p_ref[ROW_W1 + j:ROW_W1 + j + 1, :F1], (B, F1))
            for j in range(H)]
    b1_b = jnp.broadcast_to(p_ref[ROW_B1:ROW_B1 + 1, :F1], (B, F1))
    w2_t = p_ref[ROW_W2:ROW_W2 + O, :F1]                              # (O, F1)
    b2 = p_ref[ROW_B2:ROW_B2 + 1, :O]                                 # (1, O)

    # ---- hoisted input projection: all timesteps, all gates, one MXU matmul ----
    x2 = x_ref[...].reshape(B * T, I)                                 # contiguous; row = b*T + t
    pre = jnp.dot(x2, wih, preferred_element_type=jnp.float32) + bias  # (B*T, G)
    pre = pre.reshape(B, T, G)                                        # tile-aligned split

    # ---- fully unrolled recurrence; h / c carried in vregs ----
    # sigmoid(z) = 0.5*tanh(0.5*z) + 0.5; the 0.5 pre-scale of the i/f/o gate
    # columns is folded into wih/whh/bias at pack time, so ONE tanh per step
    # covers all four lane-aligned gate slots.  Padded gate lanes stay exactly 0
    # through the recurrence (tanh(0)=0 -> c_pad, h_pad stay 0).
    c = jnp.zeros((B, LANE), jnp.float32)
    h = jnp.zeros((B, LANE), jnp.float32)
    h_bcast = None
    for t in range(T):
        gates = pre[:, t, :]                                          # (B, G) static slice
        if t > 0:
            for j in range(H):                                        # recurrent part: VPU FMAs
                gates = gates + h_bcast[j] * whh_b[j]
        tg = jnp.tanh(gates)                                          # one EUP pass, 4 gate slots
        i_g = 0.5 * tg[:, 0 * LANE:1 * LANE] + 0.5
        f_g = 0.5 * tg[:, 1 * LANE:2 * LANE] + 0.5
        g_g = tg[:, 2 * LANE:3 * LANE]
        o_g = 0.5 * tg[:, 3 * LANE:4 * LANE] + 0.5
        c = i_g * g_g if t == 0 else f_g * c + i_g * g_g              # h0 = c0 = 0
        h = o_g * jnp.tanh(c)
        if t + 1 < T:
            # issue next step's h lane-broadcasts (XLU) now so they overlap the
            # remaining EUP/VPU work of this step
            h_bcast = [jnp.broadcast_to(h[:, j:j + 1], (B, G)) for j in range(H)]

    # ---- head: hn.view(-1, H) -> relu -> fc_1 (H VPU FMAs) -> relu -> fc ----
    hn = jnp.maximum(h, 0.0)
    z1 = b1_b
    for j in range(H):
        z1 = z1 + jnp.broadcast_to(hn[:, j:j + 1], (B, F1)) * w1_b[j]
    z1 = jnp.maximum(z1, 0.0)
    out = jnp.dot(z1, w2_t.T, preferred_element_type=jnp.float32) + b2
    out_ref[...] = out.astype(out_ref.dtype)


def pack_params(params):
    """One-time prepack (outside jit): transpose, gate-pad to 128-lane slots,
    fold the tanh-sigmoid 0.5 pre-scale into the i/f/o gate columns, combine
    biases, and lay everything into ONE contiguous (SLAB_ROWS, 512) f32 slab
    so the kernel needs a single parameter DMA."""
    H, I, F1, O = HIDDEN_SIZE, INPUT_SIZE, FC1_SIZE, OUTPUT_SIZE

    wih_t = params["w_ih"].T.astype(jnp.float32)                          # (I, 4H)
    whh_t = params["w_hh"].T.astype(jnp.float32)                          # (H, 4H)
    b = (params["b_ih"] + params["b_hh"]).astype(jnp.float32)[None, :]    # (1, 4H)

    gate_scale = (0.5, 0.5, 1.0, 0.5)   # [i, f, g, o]: sigmoid(z) = 0.5*tanh(0.5*z)+0.5

    def pad_gates(w):                   # (rows, 4H) -> (rows, GATES), one gate per lane slot
        rows = w.shape[0]
        out = jnp.zeros((rows, GATES), jnp.float32)
        for g in range(4):
            out = out.at[:, g * LANE:g * LANE + H].set(
                gate_scale[g] * w[:, g * H:(g + 1) * H])
        return out

    slab = jnp.zeros((SLAB_ROWS, GATES), jnp.float32)
    slab = slab.at[ROW_WIH:ROW_WIH + I, :].set(pad_gates(wih_t))
    slab = slab.at[ROW_WHH:ROW_WHH + H, :].set(pad_gates(whh_t))
    slab = slab.at[ROW_B:ROW_B + 1, :].set(pad_gates(b))
    slab = slab.at[ROW_W1:ROW_W1 + H, :F1].set(params["w_fc1"].T.astype(jnp.float32))
    slab = slab.at[ROW_B1:ROW_B1 + 1, :F1].set(params["b_fc1"].astype(jnp.float32)[None, :])
    slab = slab.at[ROW_W2:ROW_W2 + O, :F1].set(params["w_fc"].astype(jnp.float32))
    slab = slab.at[ROW_B2:ROW_B2 + 1, :O].set(params["b_fc"].astype(jnp.float32)[None, :])
    return slab


@jax.jit
def mylstm_forward(x, slab):
    """x: (B, T, input_size), batch-first like the PyTorch module."""
    B, T, I = x.shape
    O = OUTPUT_SIZE

    flops = (2 * B * T * I * GATES                      # input projection (MXU)
             + T * B * GATES * (2 * HIDDEN_SIZE + 8)    # recurrence (VPU)
             + 2 * B * HIDDEN_SIZE * FC1_SIZE           # fc_1 (VPU FMAs)
             + 2 * B * FC1_SIZE * O)                    # fc (MXU)
    transcendentals = T * 5 * B * LANE                  # 4 gate-slot tanh + tanh(c) per step
    bytes_accessed = 4 * (B * T * I + SLAB_ROWS * GATES + B * O)

    vmem = pl.BlockSpec(memory_space=pltpu.MemorySpace.VMEM)
    return pl.pallas_call(
        lstm_head_kernel,
        out_shape=jax.ShapeDtypeStruct((B, O), jnp.float32),
        in_specs=[vmem, vmem],
        out_specs=vmem,
        compiler_params=pltpu.CompilerParams(vmem_limit_bytes=2 * 1024 * 1024),
        cost_estimate=pl.CostEstimate(flops=flops,
                                      transcendentals=transcendentals,
                                      bytes_accessed=bytes_accessed),
    )(x, slab)


def init_params(key, input_size, hidden_size, output_size, fc1=FC1_SIZE):
    """Deterministic synthetic parameters (PyTorch-style uniform ranges)."""
    ks = jax.random.split(key, 8)
    s_lstm = 1.0 / jnp.sqrt(jnp.float32(hidden_size))
    s_fc1 = 1.0 / jnp.sqrt(jnp.float32(hidden_size))
    s_fc = 1.0 / jnp.sqrt(jnp.float32(fc1))
    u = lambda k, shape, s: jax.random.uniform(k, shape, jnp.float32, -s, s)
    return {
        # PyTorch LSTM layout: (4H, in), gate order [i, f, g, o]
        "w_ih": u(ks[0], (4 * hidden_size, input_size), s_lstm),
        "w_hh": u(ks[1], (4 * hidden_size, hidden_size), s_lstm),
        "b_ih": u(ks[2], (4 * hidden_size,), s_lstm),
        "b_hh": u(ks[3], (4 * hidden_size,), s_lstm),
        "w_fc1": u(ks[4], (fc1, hidden_size), s_fc1),
        "b_fc1": u(ks[5], (fc1,), s_fc1),
        "w_fc": u(ks[6], (output_size, fc1), s_fc),
        "b_fc": u(ks[7], (output_size,), s_fc),
    }


def reference_forward(x, params):
    """Pure-JAX reference of the PyTorch forward (for correctness check)."""
    B, T, I = x.shape
    H = params["w_hh"].shape[1]
    wih_t = params["w_ih"].T
    whh_t = params["w_hh"].T
    b = params["b_ih"] + params["b_hh"]
    h = jnp.zeros((B, H), jnp.float32)
    c = jnp.zeros((B, H), jnp.float32)
    for t in range(T):
        gates = x[:, t, :] @ wih_t + h @ whh_t + b
        i_g = jax.nn.sigmoid(gates[:, 0 * H:1 * H])
        f_g = jax.nn.sigmoid(gates[:, 1 * H:2 * H])
        g_g = jnp.tanh(gates[:, 2 * H:3 * H])
        o_g = jax.nn.sigmoid(gates[:, 3 * H:4 * H])
        c = f_g * c + i_g * g_g
        h = o_g * jnp.tanh(c)
    out = jnp.maximum(h, 0.0)
    out = jnp.maximum(out @ params["w_fc1"].T + params["b_fc1"], 0.0)
    return out @ params["w_fc"].T + params["b_fc"]


if __name__ == "__main__":
    key = jax.random.PRNGKey(0)
    k_x, k_p = jax.random.split(key)
    x = jax.random.normal(k_x, (BATCH, SEQ_LENGTH, INPUT_SIZE), jnp.float32)
    params = init_params(k_p, INPUT_SIZE, HIDDEN_SIZE, OUTPUT_SIZE)
    slab = pack_params(params)             # one-time prepack, outside jit

    out = jax.block_until_ready(mylstm_forward(x, slab))

    ref = reference_forward(x, params)
    assert out.shape == (BATCH, OUTPUT_SIZE)
    assert jnp.allclose(out, ref, atol=1e-3, rtol=1e-3), (out, ref)
    print("KERNEL_OK")
</pallas_src>

<mosaic_0001>
module attributes {stable_mosaic.version = 11 : i64} {
  func.func @lstm_head_kernel(%arg0: memref<2x8x8xf32, #tpu.memory_space<vmem>>, %arg1: memref<24x512xf32, #tpu.memory_space<vmem>>, %arg2: memref<2x4xf32, #tpu.memory_space<vmem>>) attributes {dimension_semantics = [], scalar_prefetch = 0 : i64, scratch_operands = 0 : i64, tpu.core_type = #tpu.core_type<tc>} {
    %c0 = arith.constant 0 : index
    %c0_0 = arith.constant 0 : index
    %0 = vector.load %arg1[%c0, %c0_0] : memref<24x512xf32, #tpu.memory_space<vmem>>, vector<8x512xf32>
    %c10 = arith.constant 10 : index
    %c0_1 = arith.constant 0 : index
    %1 = vector.load %arg1[%c10, %c0_1] : memref<24x512xf32, #tpu.memory_space<vmem>>, vector<1x512xf32>
    %c8 = arith.constant 8 : index
    %c0_2 = arith.constant 0 : index
    %2 = vector.load %arg1[%c8, %c0_2] : memref<24x512xf32, #tpu.memory_space<vmem>>, vector<1x512xf32>
    %3 = vector.shape_cast %2 : vector<1x512xf32> to vector<1x512xf32>
    %4 = vector.broadcast %3 : vector<1x512xf32> to vector<2x512xf32>
    %c9 = arith.constant 9 : index
    %c0_3 = arith.constant 0 : index
    %5 = vector.load %arg1[%c9, %c0_3] : memref<24x512xf32, #tpu.memory_space<vmem>>, vector<1x512xf32>
    %6 = vector.shape_cast %5 : vector<1x512xf32> to vector<1x512xf32>
    %7 = vector.broadcast %6 : vector<1x512xf32> to vector<2x512xf32>
    %c11 = arith.constant 11 : index
    %c0_4 = arith.constant 0 : index
    %8 = vector.load %arg1[%c11, %c0_4] : memref<24x512xf32, #tpu.memory_space<vmem>>, vector<1x128xf32>
    %9 = vector.shape_cast %8 : vector<1x128xf32> to vector<1x128xf32>
    %10 = vector.broadcast %9 : vector<1x128xf32> to vector<2x128xf32>
    %c12 = arith.constant 12 : index
    %c0_5 = arith.constant 0 : index
    %11 = vector.load %arg1[%c12, %c0_5] : memref<24x512xf32, #tpu.memory_space<vmem>>, vector<1x128xf32>
    %12 = vector.shape_cast %11 : vector<1x128xf32> to vector<1x128xf32>
    %13 = vector.broadcast %12 : vector<1x128xf32> to vector<2x128xf32>
    %c13 = arith.constant 13 : index
    %c0_6 = arith.constant 0 : index
    %14 = vector.load %arg1[%c13, %c0_6] : memref<24x512xf32, #tpu.memory_space<vmem>>, vector<1x128xf32>
    %15 = vector.shape_cast %14 : vector<1x128xf32> to vector<1x128xf32>
    %16 = vector.broadcast %15 : vector<1x128xf32> to vector<2x128xf32>
    %c14 = arith.constant 14 : index
    %c0_7 = arith.constant 0 : index
    %17 = vector.load %arg1[%c14, %c0_7] : memref<24x512xf32, #tpu.memory_space<vmem>>, vector<4x128xf32>
    %c18 = arith.constant 18 : index
    %c0_8 = arith.constant 0 : index
    %18 = vector.load %arg1[%c18, %c0_8] : memref<24x512xf32, #tpu.memory_space<vmem>>, vector<1x4xf32>
    %c0_9 = arith.constant 0 : index
    %c0_10 = arith.constant 0 : index
    %c0_11 = arith.constant 0 : index
    %19 = vector.load %arg0[%c0_9, %c0_10, %c0_11] : memref<2x8x8xf32, #tpu.memory_space<vmem>>, vector<2x8x8xf32>
    %20 = vector.shape_cast %19 : vector<2x8x8xf32> to vector<16x8xf32>
    %cst = arith.constant dense<0.000000e+00> : vector<16x512xf32>
    %21 = tpu.matmul %20, %0, %cst {dimension_numbers = #tpu.dot_dimension_numbers<[1], [0], [0], [1], [0, 0, 1, 1], [], []>} : vector<16x8xf32>, vector<8x512xf32>, vector<16x512xf32> -> vector<16x512xf32>
    %22 = vector.broadcast %1 : vector<1x512xf32> to vector<16x512xf32>
    %23 = arith.addf %21, %22 : vector<16x512xf32>
    %24 = vector.shape_cast %23 : vector<16x512xf32> to vector<2x8x512xf32>
    %25 = vector.extract_strided_slice %24 {offsets = [0, 0, 0], sizes = [2, 1, 512], strides = [1, 1, 1]} : vector<2x8x512xf32> to vector<2x1x512xf32>
    %26 = vector.shape_cast %25 : vector<2x1x512xf32> to vector<2x512xf32>
    %27 = math.tanh %26 : vector<2x512xf32>
    %28 = vector.extract_strided_slice %27 {offsets = [0, 0], sizes = [2, 128], strides = [1, 1]} : vector<2x512xf32> to vector<2x128xf32>
    %cst_12 = arith.constant 5.000000e-01 : f32
    %29 = vector.broadcast %cst_12 : f32 to vector<2x128xf32>
    %30 = arith.mulf %29, %28 : vector<2x128xf32>
    %cst_13 = arith.constant 5.000000e-01 : f32
    %31 = vector.broadcast %cst_13 : f32 to vector<2x128xf32>
    %32 = arith.addf %30, %31 : vector<2x128xf32>
    %33 = vector.extract_strided_slice %27 {offsets = [0, 256], sizes = [2, 128], strides = [1, 1]} : vector<2x512xf32> to vector<2x128xf32>
    %34 = vector.extract_strided_slice %27 {offsets = [0, 384], sizes = [2, 128], strides = [1, 1]} : vector<2x512xf32> to vector<2x128xf32>
    %cst_14 = arith.constant 5.000000e-01 : f32
    %35 = vector.broadcast %cst_14 : f32 to vector<2x128xf32>
    %36 = arith.mulf %35, %34 : vector<2x128xf32>
    %cst_15 = arith.constant 5.000000e-01 : f32
    %37 = vector.broadcast %cst_15 : f32 to vector<2x128xf32>
    %38 = arith.addf %36, %37 : vector<2x128xf32>
    %39 = arith.mulf %32, %33 : vector<2x128xf32>
    %40 = math.tanh %39 : vector<2x128xf32>
    %41 = arith.mulf %38, %40 : vector<2x128xf32>
    %42 = vector.extract_strided_slice %41 {offsets = [0, 0], sizes = [2, 1], strides = [1, 1]} : vector<2x128xf32> to vector<2x1xf32>
    %43 = vector.shape_cast %42 : vector<2x1xf32> to vector<2x1xf32>
    %44 = vector.broadcast %43 : vector<2x1xf32> to vector<2x512xf32>
    %45 = vector.extract_strided_slice %41 {offsets = [0, 1], sizes = [2, 1], strides = [1, 1]} : vector<2x128xf32> to vector<2x1xf32>
    %46 = vector.shape_cast %45 : vector<2x1xf32> to vector<2x1xf32>
    %47 = vector.broadcast %46 : vector<2x1xf32> to vector<2x512xf32>
    %48 = vector.extract_strided_slice %24 {offsets = [0, 1, 0], sizes = [2, 1, 512], strides = [1, 1, 1]} : vector<2x8x512xf32> to vector<2x1x512xf32>
    %49 = vector.shape_cast %48 : vector<2x1x512xf32> to vector<2x512xf32>
    %50 = arith.mulf %44, %4 : vector<2x512xf32>
    %51 = arith.addf %49, %50 : vector<2x512xf32>
    %52 = arith.mulf %47, %7 : vector<2x512xf32>
    %53 = arith.addf %51, %52 : vector<2x512xf32>
    %54 = math.tanh %53 : vector<2x512xf32>
    %55 = vector.extract_strided_slice %54 {offsets = [0, 0], sizes = [2, 128], strides = [1, 1]} : vector<2x512xf32> to vector<2x128xf32>
    %cst_16 = arith.constant 5.000000e-01 : f32
    %56 = vector.broadcast %cst_16 : f32 to vector<2x128xf32>
    %57 = arith.mulf %56, %55 : vector<2x128xf32>
    %cst_17 = arith.constant 5.000000e-01 : f32
    %58 = vector.broadcast %cst_17 : f32 to vector<2x128xf32>
    %59 = arith.addf %57, %58 : vector<2x128xf32>
    %60 = vector.extract_strided_slice %54 {offsets = [0, 128], sizes = [2, 128], strides = [1, 1]} : vector<2x512xf32> to vector<2x128xf32>
    %cst_18 = arith.constant 5.000000e-01 : f32
    %61 = vector.broadcast %cst_18 : f32 to vector<2x128xf32>
    %62 = arith.mulf %61, %60 : vector<2x128xf32>
    %cst_19 = arith.constant 5.000000e-01 : f32
    %63 = vector.broadcast %cst_19 : f32 to vector<2x128xf32>
    %64 = arith.addf %62, %63 : vector<2x128xf32>
    %65 = vector.extract_strided_slice %54 {offsets = [0, 256], sizes = [2, 128], strides = [1, 1]} : vector<2x512xf32> to vector<2x128xf32>
    %66 = vector.extract_strided_slice %54 {offsets = [0, 384], sizes = [2, 128], strides = [1, 1]} : vector<2x512xf32> to vector<2x128xf32>
    %cst_20 = arith.constant 5.000000e-01 : f32
    %67 = vector.broadcast %cst_20 : f32 to vector<2x128xf32>
    %68 = arith.mulf %67, %66 : vector<2x128xf32>
    %cst_21 = arith.constant 5.000000e-01 : f32
    %69 = vector.broadcast %cst_21 : f32 to vector<2x128xf32>
    %70 = arith.addf %68, %69 : vector<2x128xf32>
    %71 = arith.mulf %64, %39 : vector<2x128xf32>
    %72 = arith.mulf %59, %65 : vector<2x128xf32>
    %73 = arith.addf %71, %72 : vector<2x128xf32>
    %74 = math.tanh %73 : vector<2x128xf32>
    %75 = arith.mulf %70, %74 : vector<2x128xf32>
    %76 = vector.extract_strided_slice %75 {offsets = [0, 0], sizes = [2, 1], strides = [1, 1]} : vector<2x128xf32> to vector<2x1xf32>
    %77 = vector.shape_cast %76 : vector<2x1xf32> to vector<2x1xf32>
    %78 = vector.broadcast %77 : vector<2x1xf32> to vector<2x512xf32>
    %79 = vector.extract_strided_slice %75 {offsets = [0, 1], sizes = [2, 1], strides = [1, 1]} : vector<2x128xf32> to vector<2x1xf32>
    %80 = vector.shape_cast %79 : vector<2x1xf32> to vector<2x1xf32>
    %81 = vector.broadcast %80 : vector<2x1xf32> to vector<2x512xf32>
    %82 = vector.extract_strided_slice %24 {offsets = [0, 2, 0], sizes = [2, 1, 512], strides = [1, 1, 1]} : vector<2x8x512xf32> to vector<2x1x512xf32>
    %83 = vector.shape_cast %82 : vector<2x1x512xf32> to vector<2x512xf32>
    %84 = arith.mulf %78, %4 : vector<2x512xf32>
    %85 = arith.addf %83, %84 : vector<2x512xf32>
    %86 = arith.mulf %81, %7 : vector<2x512xf32>
    %87 = arith.addf %85, %86 : vector<2x512xf32>
    %88 = math.tanh %87 : vector<2x512xf32>
    %89 = vector.extract_strided_slice %88 {offsets = [0, 0], sizes = [2, 128], strides = [1, 1]} : vector<2x512xf32> to vector<2x128xf32>
    %cst_22 = arith.constant 5.000000e-01 : f32
    %90 = vector.broadcast %cst_22 : f32 to vector<2x128xf32>
    %91 = arith.mulf %90, %89 : vector<2x128xf32>
    %cst_23 = arith.constant 5.000000e-01 : f32
    %92 = vector.broadcast %cst_23 : f32 to vector<2x128xf32>
    %93 = arith.addf %91, %92 : vector<2x128xf32>
    %94 = vector.extract_strided_slice %88 {offsets = [0, 128], sizes = [2, 128], strides = [1, 1]} : vector<2x512xf32> to vector<2x128xf32>
    %cst_24 = arith.constant 5.000000e-01 : f32
    %95 = vector.broadcast %cst_24 : f32 to vector<2x128xf32>
    %96 = arith.mulf %95, %94 : vector<2x128xf32>
    %cst_25 = arith.constant 5.000000e-01 : f32
    %97 = vector.broadcast %cst_25 : f32 to vector<2x128xf32>
    %98 = arith.addf %96, %97 : vector<2x128xf32>
    %99 = vector.extract_strided_slice %88 {offsets = [0, 256], sizes = [2, 128], strides = [1, 1]} : vector<2x512xf32> to vector<2x128xf32>
    %100 = vector.extract_strided_slice %88 {offsets = [0, 384], sizes = [2, 128], strides = [1, 1]} : vector<2x512xf32> to vector<2x128xf32>
    %cst_26 = arith.constant 5.000000e-01 : f32
    %101 = vector.broadcast %cst_26 : f32 to vector<2x128xf32>
    %102 = arith.mulf %101, %100 : vector<2x128xf32>
    %cst_27 = arith.constant 5.000000e-01 : f32
    %103 = vector.broadcast %cst_27 : f32 to vector<2x128xf32>
    %104 = arith.addf %102, %103 : vector<2x128xf32>
    %105 = arith.mulf %98, %73 : vector<2x128xf32>
    %106 = arith.mulf %93, %99 : vector<2x128xf32>
    %107 = arith.addf %105, %106 : vector<2x128xf32>
    %108 = math.tanh %107 : vector<2x128xf32>
    %109 = arith.mulf %104, %108 : vector<2x128xf32>
    %110 = vector.extract_strided_slice %109 {offsets = [0, 0], sizes = [2, 1], strides = [1, 1]} : vector<2x128xf32> to vector<2x1xf32>
    %111 = vector.shape_cast %110 : vector<2x1xf32> to vector<2x1xf32>
    %112 = vector.broadcast %111 : vector<2x1xf32> to vector<2x512xf32>
    %113 = vector.extract_strided_slice %109 {offsets = [0, 1], sizes = [2, 1], strides = [1, 1]} : vector<2x128xf32> to vector<2x1xf32>
    %114 = vector.shape_cast %113 : vector<2x1xf32> to vector<2x1xf32>
    %115 = vector.broadcast %114 : vector<2x1xf32> to vector<2x512xf32>
    %116 = vector.extract_strided_slice %24 {offsets = [0, 3, 0], sizes = [2, 1, 512], strides = [1, 1, 1]} : vector<2x8x512xf32> to vector<2x1x512xf32>
    %117 = vector.shape_cast %116 : vector<2x1x512xf32> to vector<2x512xf32>
    %118 = arith.mulf %112, %4 : vector<2x512xf32>
    %119 = arith.addf %117, %118 : vector<2x512xf32>
    %120 = arith.mulf %115, %7 : vector<2x512xf32>
    %121 = arith.addf %119, %120 : vector<2x512xf32>
    %122 = math.tanh %121 : vector<2x512xf32>
    %123 = vector.extract_strided_slice %122 {offsets = [0, 0], sizes = [2, 128], strides = [1, 1]} : vector<2x512xf32> to vector<2x128xf32>
    %cst_28 = arith.constant 5.000000e-01 : f32
    %124 = vector.broadcast %cst_28 : f32 to vector<2x128xf32>
    %125 = arith.mulf %124, %123 : vector<2x128xf32>
    %cst_29 = arith.constant 5.000000e-01 : f32
    %126 = vector.broadcast %cst_29 : f32 to vector<2x128xf32>
    %127 = arith.addf %125, %126 : vector<2x128xf32>
    %128 = vector.extract_strided_slice %122 {offsets = [0, 128], sizes = [2, 128], strides = [1, 1]} : vector<2x512xf32> to vector<2x128xf32>
    %cst_30 = arith.constant 5.000000e-01 : f32
    %129 = vector.broadcast %cst_30 : f32 to vector<2x128xf32>
    %130 = arith.mulf %129, %128 : vector<2x128xf32>
    %cst_31 = arith.constant 5.000000e-01 : f32
    %131 = vector.broadcast %cst_31 : f32 to vector<2x128xf32>
    %132 = arith.addf %130, %131 : vector<2x128xf32>
    %133 = vector.extract_strided_slice %122 {offsets = [0, 256], sizes = [2, 128], strides = [1, 1]} : vector<2x512xf32> to vector<2x128xf32>
    %134 = vector.extract_strided_slice %122 {offsets = [0, 384], sizes = [2, 128], strides = [1, 1]} : vector<2x512xf32> to vector<2x128xf32>
    %cst_32 = arith.constant 5.000000e-01 : f32
    %135 = vector.broadcast %cst_32 : f32 to vector<2x128xf32>
    %136 = arith.mulf %135, %134 : vector<2x128xf32>
    %cst_33 = arith.constant 5.000000e-01 : f32
    %137 = vector.broadcast %cst_33 : f32 to vector<2x128xf32>
    %138 = arith.addf %136, %137 : vector<2x128xf32>
    %139 = arith.mulf %132, %107 : vector<2x128xf32>
    %140 = arith.mulf %127, %133 : vector<2x128xf32>
    %141 = arith.addf %139, %140 : vector<2x128xf32>
    %142 = math.tanh %141 : vector<2x128xf32>
    %143 = arith.mulf %138, %142 : vector<2x128xf32>
    %144 = vector.extract_strided_slice %143 {offsets = [0, 0], sizes = [2, 1], strides = [1, 1]} : vector<2x128xf32> to vector<2x1xf32>
    %145 = vector.shape_cast %144 : vector<2x1xf32> to vector<2x1xf32>
    %146 = vector.broadcast %145 : vector<2x1xf32> to vector<2x512xf32>
    %147 = vector.extract_strided_slice %143 {offsets = [0, 1], sizes = [2, 1], strides = [1, 1]} : vector<2x128xf32> to vector<2x1xf32>
    %148 = vector.shape_cast %147 : vector<2x1xf32> to vector<2x1xf32>
    %149 = vector.broadcast %148 : vector<2x1xf32> to vector<2x512xf32>
    %150 = vector.extract_strided_slice %24 {offsets = [0, 4, 0], sizes = [2, 1, 512], strides = [1, 1, 1]} : vector<2x8x512xf32> to vector<2x1x512xf32>
    %151 = vector.shape_cast %150 : vector<2x1x512xf32> to vector<2x512xf32>
    %152 = arith.mulf %146, %4 : vector<2x512xf32>
    %153 = arith.addf %151, %152 : vector<2x512xf32>
    %154 = arith.mulf %149, %7 : vector<2x512xf32>
    %155 = arith.addf %153, %154 : vector<2x512xf32>
    %156 = math.tanh %155 : vector<2x512xf32>
    %157 = vector.extract_strided_slice %156 {offsets = [0, 0], sizes = [2, 128], strides = [1, 1]} : vector<2x512xf32> to vector<2x128xf32>
    %cst_34 = arith.constant 5.000000e-01 : f32
    %158 = vector.broadcast %cst_34 : f32 to vector<2x128xf32>
    %159 = arith.mulf %158, %157 : vector<2x128xf32>
    %cst_35 = arith.constant 5.000000e-01 : f32
    %160 = vector.broadcast %cst_35 : f32 to vector<2x128xf32>
    %161 = arith.addf %159, %160 : vector<2x128xf32>
    %162 = vector.extract_strided_slice %156 {offsets = [0, 128], sizes = [2, 128], strides = [1, 1]} : vector<2x512xf32> to vector<2x128xf32>
    %cst_36 = arith.constant 5.000000e-01 : f32
    %163 = vector.broadcast %cst_36 : f32 to vector<2x128xf32>
    %164 = arith.mulf %163, %162 : vector<2x128xf32>
    %cst_37 = arith.constant 5.000000e-01 : f32
    %165 = vector.broadcast %cst_37 : f32 to vector<2x128xf32>
    %166 = arith.addf %164, %165 : vector<2x128xf32>
    %167 = vector.extract_strided_slice %156 {offsets = [0, 256], sizes = [2, 128], strides = [1, 1]} : vector<2x512xf32> to vector<2x128xf32>
    %168 = vector.extract_strided_slice %156 {offsets = [0, 384], sizes = [2, 128], strides = [1, 1]} : vector<2x512xf32> to vector<2x128xf32>
    %cst_38 = arith.constant 5.000000e-01 : f32
    %169 = vector.broadcast %cst_38 : f32 to vector<2x128xf32>
    %170 = arith.mulf %169, %168 : vector<2x128xf32>
    %cst_39 = arith.constant 5.000000e-01 : f32
    %171 = vector.broadcast %cst_39 : f32 to vector<2x128xf32>
    %172 = arith.addf %170, %171 : vector<2x128xf32>
    %173 = arith.mulf %166, %141 : vector<2x128xf32>
    %174 = arith.mulf %161, %167 : vector<2x128xf32>
    %175 = arith.addf %173, %174 : vector<2x128xf32>
    %176 = math.tanh %175 : vector<2x128xf32>
    %177 = arith.mulf %172, %176 : vector<2x128xf32>
    %178 = vector.extract_strided_slice %177 {offsets = [0, 0], sizes = [2, 1], strides = [1, 1]} : vector<2x128xf32> to vector<2x1xf32>
    %179 = vector.shape_cast %178 : vector<2x1xf32> to vector<2x1xf32>
    %180 = vector.broadcast %179 : vector<2x1xf32> to vector<2x512xf32>
    %181 = vector.extract_strided_slice %177 {offsets = [0, 1], sizes = [2, 1], strides = [1, 1]} : vector<2x128xf32> to vector<2x1xf32>
    %182 = vector.shape_cast %181 : vector<2x1xf32> to vector<2x1xf32>
    %183 = vector.broadcast %182 : vector<2x1xf32> to vector<2x512xf32>
    %184 = vector.extract_strided_slice %24 {offsets = [0, 5, 0], sizes = [2, 1, 512], strides = [1, 1, 1]} : vector<2x8x512xf32> to vector<2x1x512xf32>
    %185 = vector.shape_cast %184 : vector<2x1x512xf32> to vector<2x512xf32>
    %186 = arith.mulf %180, %4 : vector<2x512xf32>
    %187 = arith.addf %185, %186 : vector<2x512xf32>
    %188 = arith.mulf %183, %7 : vector<2x512xf32>
    %189 = arith.addf %187, %188 : vector<2x512xf32>
    %190 = math.tanh %189 : vector<2x512xf32>
    %191 = vector.extract_strided_slice %190 {offsets = [0, 0], sizes = [2, 128], strides = [1, 1]} : vector<2x512xf32> to vector<2x128xf32>
    %cst_40 = arith.constant 5.000000e-01 : f32
    %192 = vector.broadcast %cst_40 : f32 to vector<2x128xf32>
    %193 = arith.mulf %192, %191 : vector<2x128xf32>
    %cst_41 = arith.constant 5.000000e-01 : f32
    %194 = vector.broadcast %cst_41 : f32 to vector<2x128xf32>
    %195 = arith.addf %193, %194 : vector<2x128xf32>
    %196 = vector.extract_strided_slice %190 {offsets = [0, 128], sizes = [2, 128], strides = [1, 1]} : vector<2x512xf32> to vector<2x128xf32>
    %cst_42 = arith.constant 5.000000e-01 : f32
    %197 = vector.broadcast %cst_42 : f32 to vector<2x128xf32>
    %198 = arith.mulf %197, %196 : vector<2x128xf32>
    %cst_43 = arith.constant 5.000000e-01 : f32
    %199 = vector.broadcast %cst_43 : f32 to vector<2x128xf32>
    %200 = arith.addf %198, %199 : vector<2x128xf32>
    %201 = vector.extract_strided_slice %190 {offsets = [0, 256], sizes = [2, 128], strides = [1, 1]} : vector<2x512xf32> to vector<2x128xf32>
    %202 = vector.extract_strided_slice %190 {offsets = [0, 384], sizes = [2, 128], strides = [1, 1]} : vector<2x512xf32> to vector<2x128xf32>
    %cst_44 = arith.constant 5.000000e-01 : f32
    %203 = vector.broadcast %cst_44 : f32 to vector<2x128xf32>
    %204 = arith.mulf %203, %202 : vector<2x128xf32>
    %cst_45 = arith.constant 5.000000e-01 : f32
    %205 = vector.broadcast %cst_45 : f32 to vector<2x128xf32>
    %206 = arith.addf %204, %205 : vector<2x128xf32>
    %207 = arith.mulf %200, %175 : vector<2x128xf32>
    %208 = arith.mulf %195, %201 : vector<2x128xf32>
    %209 = arith.addf %207, %208 : vector<2x128xf32>
    %210 = math.tanh %209 : vector<2x128xf32>
    %211 = arith.mulf %206, %210 : vector<2x128xf32>
    %212 = vector.extract_strided_slice %211 {offsets = [0, 0], sizes = [2, 1], strides = [1, 1]} : vector<2x128xf32> to vector<2x1xf32>
    %213 = vector.shape_cast %212 : vector<2x1xf32> to vector<2x1xf32>
    %214 = vector.broadcast %213 : vector<2x1xf32> to vector<2x512xf32>
    %215 = vector.extract_strided_slice %211 {offsets = [0, 1], sizes = [2, 1], strides = [1, 1]} : vector<2x128xf32> to vector<2x1xf32>
    %216 = vector.shape_cast %215 : vector<2x1xf32> to vector<2x1xf32>
    %217 = vector.broadcast %216 : vector<2x1xf32> to vector<2x512xf32>
    %218 = vector.extract_strided_slice %24 {offsets = [0, 6, 0], sizes = [2, 1, 512], strides = [1, 1, 1]} : vector<2x8x512xf32> to vector<2x1x512xf32>
    %219 = vector.shape_cast %218 : vector<2x1x512xf32> to vector<2x512xf32>
    %220 = arith.mulf %214, %4 : vector<2x512xf32>
    %221 = arith.addf %219, %220 : vector<2x512xf32>
    %222 = arith.mulf %217, %7 : vector<2x512xf32>
    %223 = arith.addf %221, %222 : vector<2x512xf32>
    %224 = math.tanh %223 : vector<2x512xf32>
    %225 = vector.extract_strided_slice %224 {offsets = [0, 0], sizes = [2, 128], strides = [1, 1]} : vector<2x512xf32> to vector<2x128xf32>
    %cst_46 = arith.constant 5.000000e-01 : f32
    %226 = vector.broadcast %cst_46 : f32 to vector<2x128xf32>
    %227 = arith.mulf %226, %225 : vector<2x128xf32>
    %cst_47 = arith.constant 5.000000e-01 : f32
    %228 = vector.broadcast %cst_47 : f32 to vector<2x128xf32>
    %229 = arith.addf %227, %228 : vector<2x128xf32>
    %230 = vector.extract_strided_slice %224 {offsets = [0, 128], sizes = [2, 128], strides = [1, 1]} : vector<2x512xf32> to vector<2x128xf32>
    %cst_48 = arith.constant 5.000000e-01 : f32
    %231 = vector.broadcast %cst_48 : f32 to vector<2x128xf32>
    %232 = arith.mulf %231, %230 : vector<2x128xf32>
    %cst_49 = arith.constant 5.000000e-01 : f32
    %233 = vector.broadcast %cst_49 : f32 to vector<2x128xf32>
    %234 = arith.addf %232, %233 : vector<2x128xf32>
    %235 = vector.extract_strided_slice %224 {offsets = [0, 256], sizes = [2, 128], strides = [1, 1]} : vector<2x512xf32> to vector<2x128xf32>
    %236 = vector.extract_strided_slice %224 {offsets = [0, 384], sizes = [2, 128], strides = [1, 1]} : vector<2x512xf32> to vector<2x128xf32>
    %cst_50 = arith.constant 5.000000e-01 : f32
    %237 = vector.broadcast %cst_50 : f32 to vector<2x128xf32>
    %238 = arith.mulf %237, %236 : vector<2x128xf32>
    %cst_51 = arith.constant 5.000000e-01 : f32
    %239 = vector.broadcast %cst_51 : f32 to vector<2x128xf32>
    %240 = arith.addf %238, %239 : vector<2x128xf32>
    %241 = arith.mulf %234, %209 : vector<2x128xf32>
    %242 = arith.mulf %229, %235 : vector<2x128xf32>
    %243 = arith.addf %241, %242 : vector<2x128xf32>
    %244 = math.tanh %243 : vector<2x128xf32>
    %245 = arith.mulf %240, %244 : vector<2x128xf32>
    %246 = vector.extract_strided_slice %245 {offsets = [0, 0], sizes = [2, 1], strides = [1, 1]} : vector<2x128xf32> to vector<2x1xf32>
    %247 = vector.shape_cast %246 : vector<2x1xf32> to vector<2x1xf32>
    %248 = vector.broadcast %247 : vector<2x1xf32> to vector<2x512xf32>
    %249 = vector.extract_strided_slice %245 {offsets = [0, 1], sizes = [2, 1], strides = [1, 1]} : vector<2x128xf32> to vector<2x1xf32>
    %250 = vector.shape_cast %249 : vector<2x1xf32> to vector<2x1xf32>
    %251 = vector.broadcast %250 : vector<2x1xf32> to vector<2x512xf32>
    %252 = vector.extract_strided_slice %24 {offsets = [0, 7, 0], sizes = [2, 1, 512], strides = [1, 1, 1]} : vector<2x8x512xf32> to vector<2x1x512xf32>
    %253 = vector.shape_cast %252 : vector<2x1x512xf32> to vector<2x512xf32>
    %254 = arith.mulf %248, %4 : vector<2x512xf32>
    %255 = arith.addf %253, %254 : vector<2x512xf32>
    %256 = arith.mulf %251, %7 : vector<2x512xf32>
    %257 = arith.addf %255, %256 : vector<2x512xf32>
    %258 = math.tanh %257 : vector<2x512xf32>
    %259 = vector.extract_strided_slice %258 {offsets = [0, 0], sizes = [2, 128], strides = [1, 1]} : vector<2x512xf32> to vector<2x128xf32>
    %cst_52 = arith.constant 5.000000e-01 : f32
    %260 = vector.broadcast %cst_52 : f32 to vector<2x128xf32>
    %261 = arith.mulf %260, %259 : vector<2x128xf32>
    %cst_53 = arith.constant 5.000000e-01 : f32
    %262 = vector.broadcast %cst_53 : f32 to vector<2x128xf32>
    %263 = arith.addf %261, %262 : vector<2x128xf32>
    %264 = vector.extract_strided_slice %258 {offsets = [0, 128], sizes = [2, 128], strides = [1, 1]} : vector<2x512xf32> to vector<2x128xf32>
    %cst_54 = arith.constant 5.000000e-01 : f32
    %265 = vector.broadcast %cst_54 : f32 to vector<2x128xf32>
    %266 = arith.mulf %265, %264 : vector<2x128xf32>
    %cst_55 = arith.constant 5.000000e-01 : f32
    %267 = vector.broadcast %cst_55 : f32 to vector<2x128xf32>
    %268 = arith.addf %266, %267 : vector<2x128xf32>
    %269 = vector.extract_strided_slice %258 {offsets = [0, 256], sizes = [2, 128], strides = [1, 1]} : vector<2x512xf32> to vector<2x128xf32>
    %270 = vector.extract_strided_slice %258 {offsets = [0, 384], sizes = [2, 128], strides = [1, 1]} : vector<2x512xf32> to vector<2x128xf32>
    %cst_56 = arith.constant 5.000000e-01 : f32
    %271 = vector.broadcast %cst_56 : f32 to vector<2x128xf32>
    %272 = arith.mulf %271, %270 : vector<2x128xf32>
    %cst_57 = arith.constant 5.000000e-01 : f32
    %273 = vector.broadcast %cst_57 : f32 to vector<2x128xf32>
    %274 = arith.addf %272, %273 : vector<2x128xf32>
    %275 = arith.mulf %268, %243 : vector<2x128xf32>
    %276 = arith.mulf %263, %269 : vector<2x128xf32>
    %277 = arith.addf %275, %276 : vector<2x128xf32>
    %278 = math.tanh %277 : vector<2x128xf32>
    %279 = arith.mulf %274, %278 : vector<2x128xf32>
    %cst_58 = arith.constant 0.000000e+00 : f32
    %280 = vector.broadcast %cst_58 : f32 to vector<2x128xf32>
    %281 = arith.maximumf %279, %280 : vector<2x128xf32>
    %282 = vector.extract_strided_slice %281 {offsets = [0, 0], sizes = [2, 1], strides = [1, 1]} : vector<2x128xf32> to vector<2x1xf32>
    %283 = vector.shape_cast %282 : vector<2x1xf32> to vector<2x1xf32>
    %284 = vector.broadcast %283 : vector<2x1xf32> to vector<2x128xf32>
    %285 = arith.mulf %284, %10 : vector<2x128xf32>
    %286 = arith.addf %16, %285 : vector<2x128xf32>
    %287 = vector.extract_strided_slice %281 {offsets = [0, 1], sizes = [2, 1], strides = [1, 1]} : vector<2x128xf32> to vector<2x1xf32>
    %288 = vector.shape_cast %287 : vector<2x1xf32> to vector<2x1xf32>
    %289 = vector.broadcast %288 : vector<2x1xf32> to vector<2x128xf32>
    %290 = arith.mulf %289, %13 : vector<2x128xf32>
    %291 = arith.addf %286, %290 : vector<2x128xf32>
    %cst_59 = arith.constant 0.000000e+00 : f32
    %292 = vector.broadcast %cst_59 : f32 to vector<2x128xf32>
    %293 = arith.maximumf %291, %292 : vector<2x128xf32>
    %294 = tpu.transpose %17, [1, 0] : vector<4x128xf32> -> vector<128x4xf32>
    %cst_60 = arith.constant dense<0.000000e+00> : vector<2x4xf32>
    %295 = tpu.matmul %293, %294, %cst_60 {dimension_numbers = #tpu.dot_dimension_numbers<[1], [0], [0], [1], [0, 0, 1, 1], [], []>} : vector<2x128xf32>, vector<128x4xf32>, vector<2x4xf32> -> vector<2x4xf32>
    %296 = vector.broadcast %18 : vector<1x4xf32> to vector<2x4xf32>
    %297 = arith.addf %295, %296 : vector<2x4xf32>
    %c0_61 = arith.constant 0 : index
    %c0_62 = arith.constant 0 : index
    %298 = vector.load %arg2[%c0_61, %c0_62] : memref<2x4xf32, #tpu.memory_space<vmem>>, vector<2x4xf32>
    tpu.vector_store %arg2[%c0_61, %c0_62], %297 {strides = array<i32>} : memref<2x4xf32, #tpu.memory_space<vmem>>, vector<2x4xf32>,
    return
  }
}

</mosaic_0001>

<llo_original>
// kernel: mylstm_forward.1
$region0: #{mylstm_forward.1}
  #allocation0 [shape = 'u32[]', space=smem, size = 0x4, offset = 0x4, fixed_abs, tag = 'smem constant byte address 0x4 - core index']
  #allocation1 [shape = 'u32[72,128]{1,0:T(1,128)}', space=vmem, size = 0x9000, scoped, tag = 'internal scratch']
  %s0 = inlined_call_operand.hbm [shape: f32[2,8,8], index: 0, kind: input, shape index: {}]
  %s1 = inlined_call_operand.hbm [shape: f32[24,512], index: 1, kind: input, shape index: {}]
  %s2 = inlined_call_operand.hbm [shape: f32[2,4], index: 2, kind: output, shape index: {}]
  %s3 = sld [smem:[#allocation0]]
  $region26: #{mylstm_forward.1} parent=0
    _
  %s5 = ssub.s32 1, %s3
  %s6 = scalar_select 0, %s5, %s3
  $region1: #{mylstm_forward.1} parent=0
    #allocation2 [shape = 'u8[8192]{0}', space=vmem, size = 0x2000, scoped, tag = 'input window, operand 0, single buffered']
    #allocation3 [shape = 's32[1]{0}', space=sflag, size = 0x4, scoped, tag = 'scoped memory for mylstm_forward.1']
    #allocation4 [shape = 's32[1]{0}', space=sflag, size = 0x4, scoped, tag = 'scoped memory for mylstm_forward.1']
    #allocation5 [shape = 'u8[49152]{0}', space=vmem, size = 0xc000, scoped, tag = 'input window, operand 1, single buffered']
    #allocation6 [shape = 's32[1]{0}', space=sflag, size = 0x4, scoped, tag = 'scoped memory for mylstm_forward.1']
    #allocation7 [shape = 'u8[1024]{0}', space=vmem, size = 0x400, scoped, tag = 'output window, operand 0, single buffered']
    %7 = vsyncpa [#allocation3], 0
    %8 = vsyncpa [#allocation6], 0
    %9 = vsyncpa [#allocation4], 0
    // Predicated region
    $region2: #{mylstm_forward.1} parent=1 // pred_check
      _
    $region3: #{mylstm_forward.1} parent=1 // pred_check_branch
      %11 = sbr.rel (0) target = $region5
    $region4: #{mylstm_forward.1} parent=1 // pred_region
      %13 = vsyncadd [#allocation3], 0
      %s14 = sshll.u32 %s0, 4
      %s15 = int_to_ptr.hbm [resolvable:$true] %s14
      %s16 = sshll.u32 [#allocation2], 4
      %s17 = int_to_ptr.vmem [resolvable:$true] %s16
      %22 = dma.hbm_to_vmem [thread:$0]  %s15, 256, %s17, [#allocation3], 128, 128, 8
    $region5: #{mylstm_forward.1} parent=1 // pred_fallthru
      _
    // Predicated region
    $region6: #{mylstm_forward.1} parent=1 // pred_check
      _
    $region7: #{mylstm_forward.1} parent=1 // pred_check_branch
      %24 = sbr.rel (0) target = $region9
    $region8: #{mylstm_forward.1} parent=1 // pred_region
      %26 = vsyncadd [#allocation6], 0
      %s27 = sshll.u32 %s1, 4
      %s28 = int_to_ptr.hbm [resolvable:$true] %s27
      %s29 = sshll.u32 [#allocation5], 4
      %s30 = int_to_ptr.vmem [resolvable:$true] %s29
      %35 = dma.hbm_to_vmem [thread:$0]  %s28, 1536, %s30, [#allocation6], 512, 512, 32
    $region9: #{mylstm_forward.1} parent=1 // pred_fallthru
      _
    // Predicated region
    $region10: #{mylstm_forward.1} parent=1 // pred_check
      _
    $region11: #{mylstm_forward.1} parent=1 // pred_check_branch
      %37 = sbr.rel (0) target = $region13
    $region12: #{mylstm_forward.1} parent=1 // pred_region
      %39 = dma.done [#allocation3], 256
    $region13: #{mylstm_forward.1} parent=1 // pred_fallthru
      _
    // Predicated region
    $region14: #{mylstm_forward.1} parent=1 // pred_check
      _
    $region15: #{mylstm_forward.1} parent=1 // pred_check_branch
      %41 = sbr.rel (0) target = $region17
    $region16: #{mylstm_forward.1} parent=1 // pred_region
      %43 = dma.done [#allocation6], 1536
    $region17: #{mylstm_forward.1} parent=1 // pred_fallthru
      _
    %v44 = vld [vmem:[#allocation5] sm:$0xff]
    %v45 = vld [vmem:[#allocation5 + $0x8] sm:$0xff]
    %v46 = vld [vmem:[#allocation5 + $0x10] sm:$0xff]
    %v47 = vld [vmem:[#allocation5 + $0x18] sm:$0xff]
    %s48 = scalar_lea.vmem [#allocation5], 34
    %v49 = vld [vmem:[%s48] ss:$8 sm:$0xf]
    %s50 = scalar_lea.vmem [#allocation5], 32
    %v51 = vld [vmem:[%s50] ss:$8 sm:$0xf]
    %v53 = vperm.slane %v51, 0
    %v54 = vperm.slane %v51, 1
    %v55 = vperm.slane %v51, 2
    %v56 = vperm.slane %v51, 3
    %s61 = scalar_lea.vmem [#allocation5], 33
    %v62 = vld [vmem:[%s61] ss:$8 sm:$0xf]
    %v64 = vperm.slane %v62, 0
    %v65 = vperm.slane %v62, 1
    %v66 = vperm.slane %v62, 2
    %v67 = vperm.slane %v62, 3
    %v72 = vld [vmem:[#allocation5 + $0x23] ss:$0 sm:$0xff]
    %v73 = vld [vmem:[#allocation5 + $0x24] ss:$0 sm:$0xff]
    %v74 = vld [vmem:[#allocation5 + $0x25] ss:$0 sm:$0xff]
    %v75 = vld [vmem:[#allocation5 + $0x20] sm:$0xc0]
    %v76 = vld [vmem:[#allocation5 + $0x40] sm:$0x3]
    %v77 = vld [vmem:[#allocation5 + $0x42] ss:$0 sm:$0xff]
    %v78 = vld [vmem:[#allocation2] sm:$0xff]
    %v79 = vld [vmem:[#allocation2 + $0x8] sm:$0xff]
    %v81 = vperm.slane %v49, 0
    %v82 = vperm.slane %v49, 1
    %v83 = vperm.slane %v49, 2
    %v84 = vperm.slane %v49, 3
    %vm89 = vcmask 64512
    %v91 = vsel %vm89, %v78, 0
    %v94 = vsel %vm89, %v79, 0
    %96 = vmatpush.msra.mxu0 0.0
    %97 = vmatpush.msra.mxu0 0.0
    %98 = vmatpush.msra.mxu0 0.0
    %99 = vmatpush.msra.mxu0 0.0
    %100 = vmatpush.msra.mxu0 0.0
    %101 = vmatpush.msra.mxu0 0.0
    %102 = vmatpush.msra.mxu0 0.0
    %103 = vmatpush.msra.mxu0 0.0
    %104 = vmatpush.msra.mxu0 0.0
    %105 = vmatpush.msra.mxu0 0.0
    %106 = vmatpush.msra.mxu0 0.0
    %107 = vmatpush.msra.mxu0 0.0
    %108 = vmatpush.msra.mxu0 0.0
    %109 = vmatpush.msra.mxu0 0.0
    %110 = vmatpush.msra.mxu0 0.0
    %111 = vmatpush.msra.mxu0 %v44
    %112 = vmatmul.f32.gmra.mxu0 %v91
    %v113 = vpop.f32.mrf.mxu0
    %v114 = vadd.f32 %v81, %v113
    %115 = vmatmul.f32.gmra.mxu0 %v94
    %v116 = vpop.f32.mrf.mxu0
    %v117 = vadd.f32 %v81, %v116
    %118 = vdwg.mxu0
    %119 = vmatpush.msra.mxu0 0.0
    %120 = vmatpush.msra.mxu0 0.0
    %121 = vmatpush.msra.mxu0 0.0
    %122 = vmatpush.msra.mxu0 0.0
    %123 = vmatpush.msra.mxu0 0.0
    %124 = vmatpush.msra.mxu0 0.0
    %125 = vmatpush.msra.mxu0 0.0
    %126 = vmatpush.msra.mxu0 0.0
    %127 = vmatpush.msra.mxu0 0.0
    %128 = vmatpush.msra.mxu0 0.0
    %129 = vmatpush.msra.mxu0 0.0
    %130 = vmatpush.msra.mxu0 0.0
    %131 = vmatpush.msra.mxu0 0.0
    %132 = vmatpush.msra.mxu0 0.0
    %133 = vmatpush.msra.mxu0 0.0
    %134 = vmatpush.msra.mxu0 %v45
    %135 = vmatmul.f32.gmra.mxu0 %v91
    %v136 = vpop.f32.mrf.mxu0
    %v137 = vadd.f32 %v82, %v136
    %138 = vmatmul.f32.gmra.mxu0 %v94
    %v139 = vpop.f32.mrf.mxu0
    %v140 = vadd.f32 %v82, %v139
    %141 = vdwg.mxu0
    %142 = vmatpush.msra.mxu0 0.0
    %143 = vmatpush.msra.mxu0 0.0
    %144 = vmatpush.msra.mxu0 0.0
    %145 = vmatpush.msra.mxu0 0.0
    %146 = vmatpush.msra.mxu0 0.0
    %147 = vmatpush.msra.mxu0 0.0
    %148 = vmatpush.msra.mxu0 0.0
    %149 = vmatpush.msra.mxu0 0.0
    %150 = vmatpush.msra.mxu0 0.0
    %151 = vmatpush.msra.mxu0 0.0
    %152 = vmatpush.msra.mxu0 0.0
    %153 = vmatpush.msra.mxu0 0.0
    %154 = vmatpush.msra.mxu0 0.0
    %155 = vmatpush.msra.mxu0 0.0
    %156 = vmatpush.msra.mxu0 0.0
    %157 = vmatpush.msra.mxu0 %v46
    %158 = vmatmul.f32.gmra.mxu0 %v91
    %v159 = vpop.f32.mrf.mxu0
    %v160 = vadd.f32 %v83, %v159
    %161 = vmatmul.f32.gmra.mxu0 %v94
    %v162 = vpop.f32.mrf.mxu0
    %v163 = vadd.f32 %v83, %v162
    %164 = vdwg.mxu0
    %165 = vmatpush.msra.mxu0 0.0
    %166 = vmatpush.msra.mxu0 0.0
    %167 = vmatpush.msra.mxu0 0.0
    %168 = vmatpush.msra.mxu0 0.0
    %169 = vmatpush.msra.mxu0 0.0
    %170 = vmatpush.msra.mxu0 0.0
    %171 = vmatpush.msra.mxu0 0.0
    %172 = vmatpush.msra.mxu0 0.0
    %173 = vmatpush.msra.mxu0 0.0
    %174 = vmatpush.msra.mxu0 0.0
    %175 = vmatpush.msra.mxu0 0.0
    %176 = vmatpush.msra.mxu0 0.0
    %177 = vmatpush.msra.mxu0 0.0
    %178 = vmatpush.msra.mxu0 0.0
    %179 = vmatpush.msra.mxu0 0.0
    %180 = vmatpush.msra.mxu0 %v47
    %181 = vmatmul.f32.gmra.mxu0 %v91
    %v182 = vpop.f32.mrf.mxu0
    %v183 = vadd.f32 %v84, %v182
    %184 = vmatmul.f32.gmra.mxu0 %v94
    %v185 = vpop.f32.mrf.mxu0
    %v186 = vadd.f32 %v84, %v185
    %187 = vdwg.mxu0
    %v188 = vtanh.pop %v114
    %v189 = vtanh.pop %v160
    %v190 = vtanh.pop %v183
    %v191 = vtanh.pop %v117
    %v192 = vtanh.pop %v163
    %v193 = vtanh.pop %v186
    %v194 = vmul.f32 %v188, 0.5
    %v195 = vmul.f32 %v191, 0.5
    %v196 = vadd.f32 %v194, 0.5
    %v197 = vadd.f32 %v195, 0.5
    %v198 = vmul.f32 %v190, 0.5
    %v199 = vmul.f32 %v193, 0.5
    %v200 = vadd.f32 %v198, 0.5
    %v201 = vadd.f32 %v199, 0.5
    %v202 = vmul.f32 %v196, %v189
    %v203 = vmul.f32 %v197, %v192
    %v204 = vtanh.pop %v202
    %v205 = vtanh.pop %v203
    %v206 = vmul.f32 %v200, %v204
    %v207 = vmul.f32 %v201, %v205
    %209 = vset.pattern.permute.xlu0 0
    %210 = vperm.xlu0 %209, %v206
    %v211 = vpop.permute.xlu0 %210
    %214 = vset.pattern.permute.xlu0 0
    %215 = vperm.xlu0 %214, %v207
    %v216 = vpop.permute.xlu0 %215
    %218 = vset.pattern.permute.xlu0 1
    %219 = vperm.xlu0 %218, %v206
    %v220 = vpop.permute.xlu0 %219
    %222 = vset.pattern.permute.xlu0 1
    %223 = vperm.xlu0 %222, %v207
    %v224 = vpop.permute.xlu0 %223
    %v226 = vmul.f32 %v211, %v53
    %v227 = vmul.f32 %v211, %v54
    %v228 = vmul.f32 %v211, %v55
    %v229 = vmul.f32 %v211, %v56
    %v230 = vmul.f32 %v216, %v53
    %v231 = vmul.f32 %v216, %v54
    %v232 = vmul.f32 %v216, %v55
    %v233 = vmul.f32 %v216, %v56
    %v242 = vrot.slane %v226, 7
    %v243 = vrot.slane %v227, 7
    %v244 = vrot.slane %v228, 7
    %v245 = vrot.slane %v229, 7
    %v246 = vrot.slane %v230, 7
    %v247 = vrot.slane %v231, 7
    %v248 = vrot.slane %v232, 7
    %v249 = vrot.slane %v233, 7
    %v258 = vadd.f32 %v114, %v242
    %v259 = vadd.f32 %v137, %v243
    %v260 = vadd.f32 %v160, %v244
    %v261 = vadd.f32 %v183, %v245
    %v262 = vadd.f32 %v117, %v246
    %v263 = vadd.f32 %v140, %v247
    %v264 = vadd.f32 %v163, %v248
    %v265 = vadd.f32 %v186, %v249
    %v266 = vmul.f32 %v220, %v64
    %v267 = vmul.f32 %v220, %v65
    %v268 = vmul.f32 %v220, %v66
    %v269 = vmul.f32 %v220, %v67
    %v270 = vmul.f32 %v224, %v64
    %v271 = vmul.f32 %v224, %v65
    %v272 = vmul.f32 %v224, %v66
    %v273 = vmul.f32 %v224, %v67
    %v282 = vrot.slane %v266, 7
    %v283 = vrot.slane %v267, 7
    %v284 = vrot.slane %v268, 7
    %v285 = vrot.slane %v269, 7
    %v286 = vrot.slane %v270, 7
    %v287 = vrot.slane %v271, 7
    %v288 = vrot.slane %v272, 7
    %v289 = vrot.slane %v273, 7
    %v298 = vadd.f32 %v258, %v282
    %v299 = vadd.f32 %v259, %v283
    %v300 = vadd.f32 %v260, %v284
    %v301 = vadd.f32 %v261, %v285
    %v302 = vadd.f32 %v262, %v286
    %v303 = vadd.f32 %v263, %v287
    %v304 = vadd.f32 %v264, %v288
    %v305 = vadd.f32 %v265, %v289
    %v306 = vtanh.pop %v298
    %v307 = vtanh.pop %v299
    %v308 = vtanh.pop %v300
    %v309 = vtanh.pop %v301
    %v310 = vtanh.pop %v302
    %v311 = vtanh.pop %v303
    %v312 = vtanh.pop %v304
    %v313 = vtanh.pop %v305
    %v314 = vmul.f32 %v306, 0.5
    %v315 = vmul.f32 %v310, 0.5
    %v316 = vadd.f32 %v314, 0.5
    %v317 = vadd.f32 %v315, 0.5
    %v318 = vmul.f32 %v307, 0.5
    %v319 = vmul.f32 %v311, 0.5
    %v320 = vadd.f32 %v318, 0.5
    %v321 = vadd.f32 %v319, 0.5
    %v322 = vmul.f32 %v309, 0.5
    %v323 = vmul.f32 %v313, 0.5
    %v324 = vadd.f32 %v322, 0.5
    %v325 = vadd.f32 %v323, 0.5
    %v328 = vrot.slane %v202, 7
    %v329 = vrot.slane %v203, 7
    %v332 = vmul.f32 %v320, %v328
    %v333 = vmul.f32 %v321, %v329
    %v334 = vmul.f32 %v316, %v308
    %v335 = vmul.f32 %v317, %v312
    %v336 = vadd.f32 %v332, %v334
    %v337 = vadd.f32 %v333, %v335
    %v338 = vtanh.pop %v336
    %v339 = vtanh.pop %v337
    %v340 = vmul.f32 %v324, %v338
    %v341 = vmul.f32 %v325, %v339
    %343 = vset.pattern.permute.xlu0 0
    %344 = vperm.xlu0 %343, %v340
    %v345 = vpop.permute.xlu0 %344
    %348 = vset.pattern.permute.xlu0 0
    %349 = vperm.xlu0 %348, %v341
    %v350 = vpop.permute.xlu0 %349
    %352 = vset.pattern.permute.xlu0 1
    %353 = vperm.xlu0 %352, %v340
    %v354 = vpop.permute.xlu0 %353
    %356 = vset.pattern.permute.xlu0 1
    %357 = vperm.xlu0 %356, %v341
    %v358 = vpop.permute.xlu0 %357
    %v360 = vmul.f32 %v345, %v53
    %v361 = vmul.f32 %v345, %v54
    %v362 = vmul.f32 %v345, %v55
    %v363 = vmul.f32 %v345, %v56
    %v364 = vmul.f32 %v350, %v53
    %v365 = vmul.f32 %v350, %v54
    %v366 = vmul.f32 %v350, %v55
    %v367 = vmul.f32 %v350, %v56
    %v376 = vrot.slane %v360, 7
    %v377 = vrot.slane %v361, 7
    %v378 = vrot.slane %v362, 7
    %v379 = vrot.slane %v363, 7
    %v380 = vrot.slane %v364, 7
    %v381 = vrot.slane %v365, 7
    %v382 = vrot.slane %v366, 7
    %v383 = vrot.slane %v367, 7
    %v392 = vadd.f32 %v114, %v376
    %v393 = vadd.f32 %v137, %v377
    %v394 = vadd.f32 %v160, %v378
    %v395 = vadd.f32 %v183, %v379
    %v396 = vadd.f32 %v117, %v380
    %v397 = vadd.f32 %v140, %v381
    %v398 = vadd.f32 %v163, %v382
    %v399 = vadd.f32 %v186, %v383
    %v400 = vmul.f32 %v354, %v64
    %v401 = vmul.f32 %v354, %v65
    %v402 = vmul.f32 %v354, %v66
    %v403 = vmul.f32 %v354, %v67
    %v404 = vmul.f32 %v358, %v64
    %v405 = vmul.f32 %v358, %v65
    %v406 = vmul.f32 %v358, %v66
    %v407 = vmul.f32 %v358, %v67
    %v416 = vrot.slane %v400, 7
    %v417 = vrot.slane %v401, 7
    %v418 = vrot.slane %v402, 7
    %v419 = vrot.slane %v403, 7
    %v420 = vrot.slane %v404, 7
    %v421 = vrot.slane %v405, 7
    %v422 = vrot.slane %v406, 7
    %v423 = vrot.slane %v407, 7
    %v432 = vadd.f32 %v392, %v416
    %v433 = vadd.f32 %v393, %v417
    %v434 = vadd.f32 %v394, %v418
    %v435 = vadd.f32 %v395, %v419
    %v436 = vadd.f32 %v396, %v420
    %v437 = vadd.f32 %v397, %v421
    %v438 = vadd.f32 %v398, %v422
    %v439 = vadd.f32 %v399, %v423
    %v440 = vtanh.pop %v432
    %v441 = vtanh.pop %v433
    %v442 = vtanh.pop %v434
    %v443 = vtanh.pop %v435
    %v444 = vtanh.pop %v436
    %v445 = vtanh.pop %v437
    %v446 = vtanh.pop %v438
    %v447 = vtanh.pop %v439
    %v448 = vmul.f32 %v440, 0.5
    %v449 = vmul.f32 %v444, 0.5
    %v450 = vadd.f32 %v448, 0.5
    %v451 = vadd.f32 %v449, 0.5
    %v452 = vmul.f32 %v441, 0.5
    %v453 = vmul.f32 %v445, 0.5
    %v454 = vadd.f32 %v452, 0.5
    %v455 = vadd.f32 %v453, 0.5
    %v456 = vmul.f32 %v443, 0.5
    %v457 = vmul.f32 %v447, 0.5
    %v458 = vadd.f32 %v456, 0.5
    %v459 = vadd.f32 %v457, 0.5
    %v462 = vrot.slane %v336, 7
    %v463 = vrot.slane %v337, 7
    %v466 = vmul.f32 %v454, %v462
    %v467 = vmul.f32 %v455, %v463
    %v468 = vmul.f32 %v450, %v442
    %v469 = vmul.f32 %v451, %v446
    %v470 = vadd.f32 %v466, %v468
    %v471 = vadd.f32 %v467, %v469
    %v472 = vtanh.pop %v470
    %v473 = vtanh.pop %v471
    %v474 = vmul.f32 %v458, %v472
    %v475 = vmul.f32 %v459, %v473
    %477 = vset.pattern.permute.xlu0 0
    %478 = vperm.xlu0 %477, %v474
    %v479 = vpop.permute.xlu0 %478
    %482 = vset.pattern.permute.xlu0 0
    %483 = vperm.xlu0 %482, %v475
    %v484 = vpop.permute.xlu0 %483
    %486 = vset.pattern.permute.xlu0 1
    %487 = vperm.xlu0 %486, %v474
    %v488 = vpop.permute.xlu0 %487
    %490 = vset.pattern.permute.xlu0 1
    %491 = vperm.xlu0 %490, %v475
    %v492 = vpop.permute.xlu0 %491
    %v494 = vmul.f32 %v479, %v53
    %v495 = vmul.f32 %v479, %v54
    %v496 = vmul.f32 %v479, %v55
    %v497 = vmul.f32 %v479, %v56
    %v498 = vmul.f32 %v484, %v53
    %v499 = vmul.f32 %v484, %v54
    %v500 = vmul.f32 %v484, %v55
    %v501 = vmul.f32 %v484, %v56
    %v510 = vrot.slane %v494, 7
    %v511 = vrot.slane %v495, 7
    %v512 = vrot.slane %v496, 7
    %v513 = vrot.slane %v497, 7
    %v514 = vrot.slane %v498, 7
    %v515 = vrot.slane %v499, 7
    %v516 = vrot.slane %v500, 7
    %v517 = vrot.slane %v501, 7
    %v526 = vadd.f32 %v114, %v510
    %v527 = vadd.f32 %v137, %v511
    %v528 = vadd.f32 %v160, %v512
    %v529 = vadd.f32 %v183, %v513
    %v530 = vadd.f32 %v117, %v514
    %v531 = vadd.f32 %v140, %v515
    %v532 = vadd.f32 %v163, %v516
    %v533 = vadd.f32 %v186, %v517
    %v534 = vmul.f32 %v488, %v64
    %v535 = vmul.f32 %v488, %v65
    %v536 = vmul.f32 %v488, %v66
    %v537 = vmul.f32 %v488, %v67
    %v538 = vmul.f32 %v492, %v64
    %v539 = vmul.f32 %v492, %v65
    %v540 = vmul.f32 %v492, %v66
    %v541 = vmul.f32 %v492, %v67
    %v550 = vrot.slane %v534, 7
    %v551 = vrot.slane %v535, 7
    %v552 = vrot.slane %v536, 7
    %v553 = vrot.slane %v537, 7
    %v554 = vrot.slane %v538, 7
    %v555 = vrot.slane %v539, 7
    %v556 = vrot.slane %v540, 7
    %v557 = vrot.slane %v541, 7
    %v566 = vadd.f32 %v526, %v550
    %v567 = vadd.f32 %v527, %v551
    %v568 = vadd.f32 %v528, %v552
    %v569 = vadd.f32 %v529, %v553
    %v570 = vadd.f32 %v530, %v554
    %v571 = vadd.f32 %v531, %v555
    %v572 = vadd.f32 %v532, %v556
    %v573 = vadd.f32 %v533, %v557
    %v574 = vtanh.pop %v566
    %v575 = vtanh.pop %v567
    %v576 = vtanh.pop %v568
    %v577 = vtanh.pop %v569
    %v578 = vtanh.pop %v570
    %v579 = vtanh.pop %v571
    %v580 = vtanh.pop %v572
    %v581 = vtanh.pop %v573
    %v582 = vmul.f32 %v574, 0.5
    %v583 = vmul.f32 %v578, 0.5
    %v584 = vadd.f32 %v582, 0.5
    %v585 = vadd.f32 %v583, 0.5
    %v586 = vmul.f32 %v575, 0.5
    %v587 = vmul.f32 %v579, 0.5
    %v588 = vadd.f32 %v586, 0.5
    %v589 = vadd.f32 %v587, 0.5
    %v590 = vmul.f32 %v577, 0.5
    %v591 = vmul.f32 %v581, 0.5
    %v592 = vadd.f32 %v590, 0.5
    %v593 = vadd.f32 %v591, 0.5
    %v596 = vrot.slane %v470, 7
    %v597 = vrot.slane %v471, 7
    %v600 = vmul.f32 %v588, %v596
    %v601 = vmul.f32 %v589, %v597
    %v602 = vmul.f32 %v584, %v576
    %v603 = vmul.f32 %v585, %v580
    %v604 = vadd.f32 %v600, %v602
    %v605 = vadd.f32 %v601, %v603
    %v606 = vtanh.pop %v604
    %v607 = vtanh.pop %v605
    %v608 = vmul.f32 %v592, %v606
    %v609 = vmul.f32 %v593, %v607
    %611 = vset.pattern.permute.xlu0 0
    %612 = vperm.xlu0 %611, %v608
    %v613 = vpop.permute.xlu0 %612
    %616 = vset.pattern.permute.xlu0 0
    %617 = vperm.xlu0 %616, %v609
    %v618 = vpop.permute.xlu0 %617
    %620 = vset.pattern.permute.xlu0 1
    %621 = vperm.xlu0 %620, %v608
    %v622 = vpop.permute.xlu0 %621
    %624 = vset.pattern.permute.xlu0 1
    %625 = vperm.xlu0 %624, %v609
    %v626 = vpop.permute.xlu0 %625
    %v628 = vmul.f32 %v613, %v53
    %v629 = vmul.f32 %v613, %v54
    %v630 = vmul.f32 %v613, %v55
    %v631 = vmul.f32 %v613, %v56
    %v632 = vmul.f32 %v618, %v53
    %v633 = vmul.f32 %v618, %v54
    %v634 = vmul.f32 %v618, %v55
    %v635 = vmul.f32 %v618, %v56
    %v644 = vrot.slane %v628, 7
    %v645 = vrot.slane %v629, 7
    %v646 = vrot.slane %v630, 7
    %v647 = vrot.slane %v631, 7
    %v648 = vrot.slane %v632, 7
    %v649 = vrot.slane %v633, 7
    %v650 = vrot.slane %v634, 7
    %v651 = vrot.slane %v635, 7
    %v660 = vadd.f32 %v114, %v644
    %v661 = vadd.f32 %v137, %v645
    %v662 = vadd.f32 %v160, %v646
    %v663 = vadd.f32 %v183, %v647
    %v664 = vadd.f32 %v117, %v648
    %v665 = vadd.f32 %v140, %v649
    %v666 = vadd.f32 %v163, %v650
    %v667 = vadd.f32 %v186, %v651
    %v668 = vmul.f32 %v622, %v64
    %v669 = vmul.f32 %v622, %v65
    %v670 = vmul.f32 %v622, %v66
    %v671 = vmul.f32 %v622, %v67
    %v672 = vmul.f32 %v626, %v64
    %v673 = vmul.f32 %v626, %v65
    %v674 = vmul.f32 %v626, %v66
    %v675 = vmul.f32 %v626, %v67
    %v684 = vrot.slane %v668, 7
    %v685 = vrot.slane %v669, 7
    %v686 = vrot.slane %v670, 7
    %v687 = vrot.slane %v671, 7
    %v688 = vrot.slane %v672, 7
    %v689 = vrot.slane %v673, 7
    %v690 = vrot.slane %v674, 7
    %v691 = vrot.slane %v675, 7
    %v700 = vadd.f32 %v660, %v684
    %v701 = vadd.f32 %v661, %v685
    %v702 = vadd.f32 %v662, %v686
    %v703 = vadd.f32 %v663, %v687
    %v704 = vadd.f32 %v664, %v688
    %v705 = vadd.f32 %v665, %v689
    %v706 = vadd.f32 %v666, %v690
    %v707 = vadd.f32 %v667, %v691
    %v708 = vtanh.pop %v700
    %v709 = vtanh.pop %v701
    %v710 = vtanh.pop %v702
    %v711 = vtanh.pop %v703
    %v712 = vtanh.pop %v704
    %v713 = vtanh.pop %v705
    %v714 = vtanh.pop %v706
    %v715 = vtanh.pop %v707
    %v716 = vmul.f32 %v708, 0.5
    %v717 = vmul.f32 %v712, 0.5
    %v718 = vadd.f32 %v716, 0.5
    %v719 = vadd.f32 %v717, 0.5
    %v720 = vmul.f32 %v709, 0.5
    %v721 = vmul.f32 %v713, 0.5
    %v722 = vadd.f32 %v720, 0.5
    %v723 = vadd.f32 %v721, 0.5
    %v724 = vmul.f32 %v711, 0.5
    %v725 = vmul.f32 %v715, 0.5
    %v726 = vadd.f32 %v724, 0.5
    %v727 = vadd.f32 %v725, 0.5
    %v730 = vrot.slane %v604, 7
    %v731 = vrot.slane %v605, 7
    %v734 = vmul.f32 %v722, %v730
    %v735 = vmul.f32 %v723, %v731
    %v736 = vmul.f32 %v718, %v710
    %v737 = vmul.f32 %v719, %v714
    %v738 = vadd.f32 %v734, %v736
    %v739 = vadd.f32 %v735, %v737
    %v740 = vtanh.pop %v738
    %v741 = vtanh.pop %v739
    %v742 = vmul.f32 %v726, %v740
    %v743 = vmul.f32 %v727, %v741
    %745 = vset.pattern.permute.xlu0 0
    %746 = vperm.xlu0 %745, %v742
    %v747 = vpop.permute.xlu0 %746
    %750 = vset.pattern.permute.xlu0 0
    %751 = vperm.xlu0 %750, %v743
    %v752 = vpop.permute.xlu0 %751
    %754 = vset.pattern.permute.xlu0 1
    %755 = vperm.xlu0 %754, %v742
    %v756 = vpop.permute.xlu0 %755
    %758 = vset.pattern.permute.xlu0 1
    %759 = vperm.xlu0 %758, %v743
    %v760 = vpop.permute.xlu0 %759
    %v762 = vmul.f32 %v747, %v53
    %v763 = vmul.f32 %v747, %v54
    %v764 = vmul.f32 %v747, %v55
    %v765 = vmul.f32 %v747, %v56
    %v766 = vmul.f32 %v752, %v53
    %v767 = vmul.f32 %v752, %v54
    %v768 = vmul.f32 %v752, %v55
    %v769 = vmul.f32 %v752, %v56
    %v778 = vrot.slane %v762, 7
    %v779 = vrot.slane %v763, 7
    %v780 = vrot.slane %v764, 7
    %v781 = vrot.slane %v765, 7
    %v782 = vrot.slane %v766, 7
    %v783 = vrot.slane %v767, 7
    %v784 = vrot.slane %v768, 7
    %v785 = vrot.slane %v769, 7
    %v794 = vadd.f32 %v114, %v778
    %v795 = vadd.f32 %v137, %v779
    %v796 = vadd.f32 %v160, %v780
    %v797 = vadd.f32 %v183, %v781
    %v798 = vadd.f32 %v117, %v782
    %v799 = vadd.f32 %v140, %v783
    %v800 = vadd.f32 %v163, %v784
    %v801 = vadd.f32 %v186, %v785
    %v802 = vmul.f32 %v756, %v64
    %v803 = vmul.f32 %v756, %v65
    %v804 = vmul.f32 %v756, %v66
    %v805 = vmul.f32 %v756, %v67
    %v806 = vmul.f32 %v760, %v64
    %v807 = vmul.f32 %v760, %v65
    %v808 = vmul.f32 %v760, %v66
    %v809 = vmul.f32 %v760, %v67
    %v818 = vrot.slane %v802, 7
    %v819 = vrot.slane %v803, 7
    %v820 = vrot.slane %v804, 7
    %v821 = vrot.slane %v805, 7
    %v822 = vrot.slane %v806, 7
    %v823 = vrot.slane %v807, 7
    %v824 = vrot.slane %v808, 7
    %v825 = vrot.slane %v809, 7
    %v834 = vadd.f32 %v794, %v818
    %v835 = vadd.f32 %v795, %v819
    %v836 = vadd.f32 %v796, %v820
    %v837 = vadd.f32 %v797, %v821
    %v838 = vadd.f32 %v798, %v822
    %v839 = vadd.f32 %v799, %v823
    %v840 = vadd.f32 %v800, %v824
    %v841 = vadd.f32 %v801, %v825
    %v842 = vtanh.pop %v834
    %v843 = vtanh.pop %v835
    %v844 = vtanh.pop %v836
    %v845 = vtanh.pop %v837
    %v846 = vtanh.pop %v838
    %v847 = vtanh.pop %v839
    %v848 = vtanh.pop %v840
    %v849 = vtanh.pop %v841
    %v850 = vmul.f32 %v842, 0.5
    %v851 = vmul.f32 %v846, 0.5
    %v852 = vadd.f32 %v850, 0.5
    %v853 = vadd.f32 %v851, 0.5
    %v854 = vmul.f32 %v843, 0.5
    %v855 = vmul.f32 %v847, 0.5
    %v856 = vadd.f32 %v854, 0.5
    %v857 = vadd.f32 %v855, 0.5
    %v858 = vmul.f32 %v845, 0.5
    %v859 = vmul.f32 %v849, 0.5
    %v860 = vadd.f32 %v858, 0.5
    %v861 = vadd.f32 %v859, 0.5
    %v864 = vrot.slane %v738, 7
    %v865 = vrot.slane %v739, 7
    %v868 = vmul.f32 %v856, %v864
    %v869 = vmul.f32 %v857, %v865
    %v870 = vmul.f32 %v852, %v844
    %v871 = vmul.f32 %v853, %v848
    %v872 = vadd.f32 %v868, %v870
    %v873 = vadd.f32 %v869, %v871
    %v874 = vtanh.pop %v872
    %v875 = vtanh.pop %v873
    %v876 = vmul.f32 %v860, %v874
    %v877 = vmul.f32 %v861, %v875
    %879 = vset.pattern.permute.xlu0 0
    %880 = vperm.xlu0 %879, %v876
    %v881 = vpop.permute.xlu0 %880
    %884 = vset.pattern.permute.xlu0 0
    %885 = vperm.xlu0 %884, %v877
    %v886 = vpop.permute.xlu0 %885
    %888 = vset.pattern.permute.xlu0 1
    %889 = vperm.xlu0 %888, %v876
    %v890 = vpop.permute.xlu0 %889
    %892 = vset.pattern.permute.xlu0 1
    %893 = vperm.xlu0 %892, %v877
    %v894 = vpop.permute.xlu0 %893
    %v896 = vmul.f32 %v881, %v53
    %v897 = vmul.f32 %v881, %v54
    %v898 = vmul.f32 %v881, %v55
    %v899 = vmul.f32 %v881, %v56
    %v900 = vmul.f32 %v886, %v53
    %v901 = vmul.f32 %v886, %v54
    %v902 = vmul.f32 %v886, %v55
    %v903 = vmul.f32 %v886, %v56
    %v912 = vrot.slane %v896, 7
    %v913 = vrot.slane %v897, 7
    %v914 = vrot.slane %v898, 7
    %v915 = vrot.slane %v899, 7
    %v916 = vrot.slane %v900, 7
    %v917 = vrot.slane %v901, 7
    %v918 = vrot.slane %v902, 7
    %v919 = vrot.slane %v903, 7
    %v928 = vadd.f32 %v114, %v912
    %v929 = vadd.f32 %v137, %v913
    %v930 = vadd.f32 %v160, %v914
    %v931 = vadd.f32 %v183, %v915
    %v932 = vadd.f32 %v117, %v916
    %v933 = vadd.f32 %v140, %v917
    %v934 = vadd.f32 %v163, %v918
    %v935 = vadd.f32 %v186, %v919
    %v936 = vmul.f32 %v890, %v64
    %v937 = vmul.f32 %v890, %v65
    %v938 = vmul.f32 %v890, %v66
    %v939 = vmul.f32 %v890, %v67
    %v940 = vmul.f32 %v894, %v64
    %v941 = vmul.f32 %v894, %v65
    %v942 = vmul.f32 %v894, %v66
    %v943 = vmul.f32 %v894, %v67
    %v952 = vrot.slane %v936, 7
    %v953 = vrot.slane %v937, 7
    %v954 = vrot.slane %v938, 7
    %v955 = vrot.slane %v939, 7
    %v956 = vrot.slane %v940, 7
    %v957 = vrot.slane %v941, 7
    %v958 = vrot.slane %v942, 7
    %v959 = vrot.slane %v943, 7
    %v968 = vadd.f32 %v928, %v952
    %v969 = vadd.f32 %v929, %v953
    %v970 = vadd.f32 %v930, %v954
    %v971 = vadd.f32 %v931, %v955
    %v972 = vadd.f32 %v932, %v956
    %v973 = vadd.f32 %v933, %v957
    %v974 = vadd.f32 %v934, %v958
    %v975 = vadd.f32 %v935, %v959
    %v976 = vtanh.pop %v968
    %v977 = vtanh.pop %v969
    %v978 = vtanh.pop %v970
    %v979 = vtanh.pop %v971
    %v980 = vtanh.pop %v972
    %v981 = vtanh.pop %v973
    %v982 = vtanh.pop %v974
    %v983 = vtanh.pop %v975
    %v984 = vmul.f32 %v976, 0.5
    %v985 = vmul.f32 %v980, 0.5
    %v986 = vadd.f32 %v984, 0.5
    %v987 = vadd.f32 %v985, 0.5
    %v988 = vmul.f32 %v977, 0.5
    %v989 = vmul.f32 %v981, 0.5
    %v990 = vadd.f32 %v988, 0.5
    %v991 = vadd.f32 %v989, 0.5
    %v992 = vmul.f32 %v979, 0.5
    %v993 = vmul.f32 %v983, 0.5
    %v994 = vadd.f32 %v992, 0.5
    %v995 = vadd.f32 %v993, 0.5
    %v998 = vrot.slane %v872, 7
    %v999 = vrot.slane %v873, 7
    %v1002 = vmul.f32 %v990, %v998
    %v1003 = vmul.f32 %v991, %v999
    %v1004 = vmul.f32 %v986, %v978
    %v1005 = vmul.f32 %v987, %v982
    %v1006 = vadd.f32 %v1002, %v1004
    %v1007 = vadd.f32 %v1003, %v1005
    %v1008 = vtanh.pop %v1006
    %v1009 = vtanh.pop %v1007
    %v1010 = vmul.f32 %v994, %v1008
    %v1011 = vmul.f32 %v995, %v1009
    %1013 = vset.pattern.permute.xlu0 0
    %1014 = vperm.xlu0 %1013, %v1010
    %v1015 = vpop.permute.xlu0 %1014
    %1018 = vset.pattern.permute.xlu0 0
    %1019 = vperm.xlu0 %1018, %v1011
    %v1020 = vpop.permute.xlu0 %1019
    %1022 = vset.pattern.permute.xlu0 1
    %1023 = vperm.xlu0 %1022, %v1010
    %v1024 = vpop.permute.xlu0 %1023
    %1026 = vset.pattern.permute.xlu0 1
    %1027 = vperm.xlu0 %1026, %v1011
    %v1028 = vpop.permute.xlu0 %1027
    %v1030 = vmul.f32 %v1015, %v53
    %v1031 = vmul.f32 %v1015, %v54
    %v1032 = vmul.f32 %v1015, %v55
    %v1033 = vmul.f32 %v1015, %v56
    %v1034 = vmul.f32 %v1020, %v53
    %v1035 = vmul.f32 %v1020, %v54
    %v1036 = vmul.f32 %v1020, %v55
    %v1037 = vmul.f32 %v1020, %v56
    %v1046 = vrot.slane %v1030, 7
    %v1047 = vrot.slane %v1031, 7
    %v1048 = vrot.slane %v1032, 7
    %v1049 = vrot.slane %v1033, 7
    %v1050 = vrot.slane %v1034, 7
    %v1051 = vrot.slane %v1035, 7
    %v1052 = vrot.slane %v1036, 7
    %v1053 = vrot.slane %v1037, 7
    %v1062 = vadd.f32 %v114, %v1046
    %v1063 = vadd.f32 %v137, %v1047
    %v1064 = vadd.f32 %v160, %v1048
    %v1065 = vadd.f32 %v183, %v1049
    %v1066 = vadd.f32 %v117, %v1050
    %v1067 = vadd.f32 %v140, %v1051
    %v1068 = vadd.f32 %v163, %v1052
    %v1069 = vadd.f32 %v186, %v1053
    %v1070 = vmul.f32 %v1024, %v64
    %v1071 = vmul.f32 %v1024, %v65
    %v1072 = vmul.f32 %v1024, %v66
    %v1073 = vmul.f32 %v1024, %v67
    %v1074 = vmul.f32 %v1028, %v64
    %v1075 = vmul.f32 %v1028, %v65
    %v1076 = vmul.f32 %v1028, %v66
    %v1077 = vmul.f32 %v1028, %v67
    %v1086 = vrot.slane %v1070, 7
    %v1087 = vrot.slane %v1071, 7
    %v1088 = vrot.slane %v1072, 7
    %v1089 = vrot.slane %v1073, 7
    %v1090 = vrot.slane %v1074, 7
    %v1091 = vrot.slane %v1075, 7
    %v1092 = vrot.slane %v1076, 7
    %v1093 = vrot.slane %v1077, 7
    %v1102 = vadd.f32 %v1062, %v1086
    %v1103 = vadd.f32 %v1063, %v1087
    %v1104 = vadd.f32 %v1064, %v1088
    %v1105 = vadd.f32 %v1065, %v1089
    %v1106 = vadd.f32 %v1066, %v1090
    %v1107 = vadd.f32 %v1067, %v1091
    %v1108 = vadd.f32 %v1068, %v1092
    %v1109 = vadd.f32 %v1069, %v1093
    %v1110 = vtanh.pop %v1102
    %v1111 = vtanh.pop %v1103
    %v1112 = vtanh.pop %v1104
    %v1113 = vtanh.pop %v1105
    %v1114 = vtanh.pop %v1106
    %v1115 = vtanh.pop %v1107
    %v1116 = vtanh.pop %v1108
    %v1117 = vtanh.pop %v1109
    %v1118 = vmul.f32 %v1110, 0.5
    %v1119 = vmul.f32 %v1114, 0.5
    %v1120 = vadd.f32 %v1118, 0.5
    %v1121 = vadd.f32 %v1119, 0.5
    %v1122 = vmul.f32 %v1111, 0.5
    %v1123 = vmul.f32 %v1115, 0.5
    %v1124 = vadd.f32 %v1122, 0.5
    %v1125 = vadd.f32 %v1123, 0.5
    %v1126 = vmul.f32 %v1113, 0.5
    %v1127 = vmul.f32 %v1117, 0.5
    %v1128 = vadd.f32 %v1126, 0.5
    %v1129 = vadd.f32 %v1127, 0.5
    %v1132 = vrot.slane %v1006, 7
    %v1133 = vrot.slane %v1007, 7
    %v1136 = vmul.f32 %v1124, %v1132
    %v1137 = vmul.f32 %v1125, %v1133
    %v1138 = vmul.f32 %v1120, %v1112
    %v1139 = vmul.f32 %v1121, %v1116
    %v1140 = vadd.f32 %v1136, %v1138
    %v1141 = vadd.f32 %v1137, %v1139
    %v1142 = vtanh.pop %v1140
    %v1143 = vtanh.pop %v1141
    %v1144 = vmul.f32 %v1128, %v1142
    %v1145 = vmul.f32 %v1129, %v1143
    %v1146 = vmax.f32 %v1144, 0.0
    %v1147 = vmax.f32 %v1145, 0.0
    %1149 = vset.pattern.permute.xlu0 0
    %1150 = vperm.xlu0 %1149, %v1146
    %v1151 = vpop.permute.xlu0 %1150
    %1154 = vset.pattern.permute.xlu0 0
    %1155 = vperm.xlu0 %1154, %v1147
    %v1156 = vpop.permute.xlu0 %1155
    %v1158 = vmul.f32 %v1151, %v72
    %v1159 = vmul.f32 %v1156, %v72
    %v1162 = vrot.slane %v1158, 7
    %v1163 = vrot.slane %v1159, 6
    %vm1164 = vcmask 1041409
    %v1165 = vsel %vm1164, %v1163, %v1162
    %v1167 = vadd.f32 %v74, %v1165
    %1168 = vset.pattern.permute.xlu0 1
    %1169 = vperm.xlu0 %1168, %v1146
    %v1170 = vpop.permute.xlu0 %1169
    %1172 = vset.pattern.permute.xlu0 1
    %1173 = vperm.xlu0 %1172, %v1147
    %v1174 = vpop.permute.xlu0 %1173
    %v1176 = vmul.f32 %v1170, %v73
    %v1177 = vmul.f32 %v1174, %v73
    %v1180 = vrot.slane %v1176, 7
    %v1181 = vrot.slane %v1177, 6
    %v1182 = vsel %vm1164, %v1181, %v1180
    %v1184 = vadd.f32 %v1167, %v1182
    %v1185 = vmax.f32 %v1184, 0.0
    %vm1188 = vcmask 1041408
    %v1189 = vrot.slane %v75, 6
    %v1190 = vrot.slane %v76, 6
    %v1191 = vsel %vm1188, %v1189, %v1190
    %1193 = vmatpush.xpose.msra.mxu0 0.0
    %1194 = vmatpush.xpose.msra.mxu0 0.0
    %1195 = vmatpush.xpose.msra.mxu0 0.0
    %1196 = vmatpush.xpose.msra.mxu0 0.0
    %1197 = vmatpush.xpose.msra.mxu0 0.0
    %1198 = vmatpush.xpose.msra.mxu0 0.0
    %1199 = vmatpush.xpose.msra.mxu0 0.0
    %1200 = vmatpush.xpose.msra.mxu0 0.0
    %1201 = vmatpush.xpose.msra.mxu0 0.0
    %1202 = vmatpush.xpose.msra.mxu0 0.0
    %1203 = vmatpush.xpose.msra.mxu0 0.0
    %1204 = vmatpush.xpose.msra.mxu0 0.0
    %1205 = vmatpush.xpose.msra.mxu0 0.0
    %1206 = vmatpush.xpose.msra.mxu0 0.0
    %1207 = vmatpush.xpose.msra.mxu0 0.0
    %1208 = vmatpush.xpose.msra.mxu0 %v1191
    %1209 = vmatmul.f32.gmra.mxu0 %v1185
    %v1210 = vpop.f32.mrf.mxu0
    %v1211 = vadd.f32 %v77, %v1210
    %1212 = vdwg.mxu0
    %vm1213 = vcmask 25600
    %1214 = vst.msk [vmem:[#allocation7] sm:$0x3] %vm1213, %v1211
    // Predicated region
    $region18: #{mylstm_forward.1} parent=1 // pred_check
      _
    $region19: #{mylstm_forward.1} parent=1 // pred_check_branch
      %1216 = sbr.rel (0) target = $region21
    $region20: #{mylstm_forward.1} parent=1 // pred_region
      %1218 = vsyncadd [#allocation4], 0
      %s1220 = sshll.u32 [#allocation7], 4
      %s1221 = int_to_ptr.vmem [resolvable:$true] %s1220
      %s1222 = sshll.u32 %s2, 4
      %s1223 = int_to_ptr.hbm [resolvable:$true] %s1222
      %1225 = dma.vmem_to_hbm [thread:$0]  %s1221, 32, %s1223, [#allocation4]
    $region21: #{mylstm_forward.1} parent=1 // pred_fallthru
      _
    // Predicated region
    $region22: #{mylstm_forward.1} parent=1 // pred_check
      _
    $region23: #{mylstm_forward.1} parent=1 // pred_check_branch
      %1227 = sbr.rel (0) target = $region25
    $region24: #{mylstm_forward.1} parent=1 // pred_region
      %1229 = dma.done [#allocation4], 32
    $region25: #{mylstm_forward.1} parent=1 // pred_fallthru
      _
    %1230 = vsyncpa [#allocation3], 1
    %1231 = vsyncpa [#allocation6], 1
    %1232 = vsyncpa [#allocation4], 1

</llo_original>
